<compile_context>
chip_gen: v6e
topology: v6e:2x2x1
jax: 0.10.0
libtpu: 0.0.40
codegen_flags: <defaults>
</compile_context>

<pallas_src>
import math

import numpy as np
import jax
import jax.numpy as jnp
from jax.experimental import pallas as pl
from jax.experimental.pallas import tpu as pltpu


# ----------------------------------------------------------------------------
# Bounded-range sine: one pi reduction + degree-9 odd polynomial.
# Valid for moderate |v| (here v in [0, 2.5*pi]); max error ~4e-6.
# ----------------------------------------------------------------------------
_INV_PI = 0.3183098861837907
_PI_A = 3.140625                  # high bits of pi (exact in f32)
_PI_B = 9.6765358979324822e-04    # pi - _PI_A
_S3 = -1.6666666666666666e-01
_S5 = 8.3333333333333332e-03
_S7 = -1.9841269841269841e-04
_S9 = 2.7557319223985893e-06


def _bounded_sin(v):
    kf = jnp.floor(v * _INV_PI + 0.5)           # k = round(v / pi), |k| small
    r = v - kf * _PI_A
    r = r - kf * _PI_B                          # r in [-pi/2, pi/2]
    sign = jnp.where((kf.astype(jnp.int32) & 1) == 0, 1.0, -1.0)
    r2 = r * r
    p = _S9
    p = p * r2 + _S7
    p = p * r2 + _S5
    p = p * r2 + _S3
    return sign * (r + r * r2 * p)              # (-1)^k * sin(r) = sin(v)


# ----------------------------------------------------------------------------
# Pallas kernel: lane-dense sine/cosine positional features
# ----------------------------------------------------------------------------
def _sine_embed_kernel(x_ref, tbl_ref, o_ref):
    # x_ref:   [R, 4]       one (n, f) box per row
    # tbl_ref: [8, 4*P]     rows 0..3: scaled one-hot matrix W (W[c, c*P+p] = scale[p],
    #                       zero elsewhere); row 4: phase (pi/2 on cos lanes, 0 on sin).
    # o_ref:   [R, 4*P]
    #
    # v[r, c*P + p] = x[r, c] * scale[p] + phase[p];  out = sin(v)
    # The broadcast+scale+sum is a [R,4]x[4,4P] contraction -> runs on the
    # otherwise-idle MXU instead of four cross-lane VPU broadcasts.
    v = jnp.dot(x_ref[...], tbl_ref[0:4, :],
                preferred_element_type=jnp.float32) + tbl_ref[4:5, :]
    o_ref[...] = _bounded_sin(v).astype(o_ref.dtype)


def _make_table(num_pos_feats, temperature):
    P = num_pos_feats
    half = P // 2
    k = np.arange(P)
    # torch: dim_t[j] = T**(2*(j//2)/P); cos lanes use even j, sin lanes odd j
    # -> both halves share exponent 2*m/P with m = p mod half.
    m = np.where(k < half, k, k - half).astype(np.float64)
    scale = (2.0 * math.pi) / (temperature ** (2.0 * m / P))             # [P]
    phase = np.where(k < half, math.pi / 2.0, 0.0)                       # [P]

    tbl = np.zeros((8, 4 * P), np.float32)
    tbl[0:4, :] = (np.eye(4)[:, :, None] * scale[None, None, :]).reshape(4, 4 * P)
    tbl[4, :] = np.tile(phase, 4)
    return jnp.asarray(tbl)


def _cdiv(a, b):
    return -(-a // b)


def _round_up(a, m):
    return _cdiv(a, m) * m


def _choose_block_rows(rows):
    # * big tiles (<=2048 rows, <=1 MiB output block) amortize the ~600-cycle
    #   per-grid-step cost; VMEM is never the constraint for this kernel.
    # * >= 2 (and an even number of) "parallel" blocks so both v7x TensorCores
    #   get balanced work whenever there is enough data.
    # * block_rows is a multiple of 8; the ragged last block is clipped by the
    #   Pallas pipeline (no HBM pad / slice round-trip).
    if rows <= 512:
        return rows                       # single block == full dim (always legal)
    max_block = 2048
    n_blocks = max(2, _cdiv(rows, max_block))
    if n_blocks % 2:
        n_blocks += 1                     # even block count -> balanced on 2 TCs
    return min(_round_up(_cdiv(rows, n_blocks), 8), _round_up(rows, 8))


def _sine_encoding_jax(x, num_pos_feats, temperature):
    # Pure-JAX path for tiny problems where the custom-call boundary dominates.
    dim_t = jnp.arange(num_pos_feats, dtype=jnp.float32)
    dim_t = temperature ** (2.0 * jnp.floor(dim_t / 2.0) / num_pos_feats)
    freq = x[:, :, :, None] * (2.0 * math.pi) / dim_t
    emb = jnp.concatenate(
        [jnp.cos(freq[..., 0::2]), jnp.sin(freq[..., 1::2])], axis=3)
    return emb.reshape(x.shape[0], -1)


def sine_encoding_tracklet(x, num_pos_feats=32, temperature=10000.0,
                           out_dtype=jnp.float32, use_pallas=None,
                           block_rows=None):
    """Pallas equivalent of SineEncodingTracklet.__call__.

    x: [N, F, 4] float in [0, 1]  ->  [N, F*4*num_pos_feats] of out_dtype.
    out_dtype=jnp.bfloat16 halves output HBM traffic (worth ~2x on v5e when
    mem-bound) if the consumer tolerates ~3e-3 relative error.
    """
    N, F, four = x.shape
    assert four == 4
    assert num_pos_feats % 2 == 0
    P = num_pos_feats
    rows = N * F

    if use_pallas is None:
        # Below ~64K output elements the pallas_call boundary dominates.
        use_pallas = rows * 4 * P >= 65536
    if not use_pallas:
        return _sine_encoding_jax(x.astype(jnp.float32), P,
                                  temperature).astype(out_dtype)

    x2 = x.reshape(rows, 4).astype(jnp.float32)
    tbl = _make_table(P, temperature)

    if block_rows is None:
        block_rows = _choose_block_rows(rows)
    n_blocks = _cdiv(rows, block_rows)

    out2 = pl.pallas_call(
        _sine_embed_kernel,
        out_shape=jax.ShapeDtypeStruct((rows, 4 * P), out_dtype),
        grid_spec=pltpu.PrefetchScalarGridSpec(
            num_scalar_prefetch=0,
            grid=(n_blocks,),
            in_specs=[
                pl.BlockSpec((block_rows, 4), lambda i: (i, 0)),
                pl.BlockSpec((8, 4 * P), lambda i: (0, 0)),
            ],
            out_specs=pl.BlockSpec((block_rows, 4 * P), lambda i: (i, 0)),
        ),
        compiler_params=pltpu.CompilerParams(
            dimension_semantics=("parallel",)),
    )(x2, tbl)

    return out2.reshape(N, F * 4 * P)


# ----------------------------------------------------------------------------
# Glue (plain JAX) reproducing the surrounding KinetTrackingBase logic
# ----------------------------------------------------------------------------
def generate_pseudo_tracklets(detections, n_frames):
    # torch.tile(detections[:, None, :4], [1, n_frames, 1])
    return jnp.tile(detections[:, None, :4], (1, n_frames, 1))


class KinetTrackingPallas:
    """Deterministic, Pallas-backed version of KinetTrackingBase's training path."""

    def __init__(self, frame_range=5, num_pos_feats=32, num_queries=8,
                 ratio_add_detections=0.5):
        self._frame_range = frame_range
        self._num_pos_feats = num_pos_feats
        self.num_queries = num_queries
        self._ratio_add_detections = ratio_add_detections
        self.dim_tracklets = 4 * num_pos_feats * frame_range

    def add_track_queries_to_target(self, target, key):
        # target['tracklets'] is [F, N, 4]; torch does .permute(1, 0, 2)
        tracklets_modified = jnp.transpose(target["tracklets"], (1, 0, 2))  # [N, F, 4]
        detections = target["detections"]
        n_tracks = tracklets_modified.shape[0]
        # NOTE: requires n_detections >= n_tracks (JAX gather clamps silently).
        assert detections.shape[0] >= n_tracks

        # TODO(synk): HungarianMatcher has no Pallas equivalent; use identity matching.
        tracks_indices = jnp.arange(n_tracks)
        det_ind = jnp.arange(n_tracks)

        # add_positive_detections_to_tracklets (torch.rand -> jax.random, deterministic)
        picked = self._ratio_add_detections > jax.random.uniform(key, (n_tracks,))
        pseudo = generate_pseudo_tracklets(detections[det_ind], self._frame_range)
        tracklets_modified = jnp.where(picked[:, None, None], pseudo, tracklets_modified)

        # TODO(synk): add_false_positives relies on data-dependent torch.randint /
        # python-list membership; we take the add_false_pos=False branch here.
        track_queries_fal_pos_mask = jnp.zeros((n_tracks,), dtype=bool)
        tracks_matching_mask = jnp.ones((n_tracks,), dtype=bool)

        # update_query_embeddings -- hot path (Pallas kernel for non-tiny sizes).
        hs_embeds = sine_encoding_tracklet(tracklets_modified, self._num_pos_feats)

        out = dict(target)
        out["tracklets_modified"] = tracklets_modified
        out["track_query_match_ids"] = tracks_indices
        out["track_query_hs_embeds"] = hs_embeds
        out["track_queries_mask"] = jnp.concatenate(
            [tracks_matching_mask, jnp.zeros((self.num_queries,), dtype=bool)])
        out["track_queries_fal_pos_mask"] = jnp.concatenate(
            [track_queries_fal_pos_mask, jnp.zeros((self.num_queries,), dtype=bool)])
        return out


# Pure-JAX reference of torch SineEncodingTracklet for validation.
def _sine_encoding_ref(x, num_pos_feats, temperature=10000.0):
    dim_t = jnp.arange(num_pos_feats, dtype=jnp.float32)
    dim_t = temperature ** (2.0 * jnp.floor(dim_t / 2.0) / num_pos_feats)
    freq = x[:, :, :, None] * math.pi * 2.0 / dim_t
    emb = jnp.concatenate([jnp.cos(freq[..., 0::2]), jnp.sin(freq[..., 1::2])], axis=3)
    return emb.reshape(x.shape[0], -1)


if __name__ == "__main__":
    key = jax.random.PRNGKey(0)
    k_trk, k_det, k_pick, k_big = jax.random.split(key, 4)

    frame_range = 5
    num_pos_feats = 32
    n_tracks = 8
    n_dets = 8
    num_queries = 8

    target = {
        # stored as [F, N, 4] like the torch code (permuted inside)
        "tracklets": jax.random.uniform(k_trk, (frame_range, n_tracks, 4),
                                        dtype=jnp.float32),
        "detections": jax.random.uniform(k_det, (n_dets, 4), dtype=jnp.float32),
        "boxes": jnp.zeros((n_tracks, 4), dtype=jnp.float32),
    }

    model = KinetTrackingPallas(frame_range=frame_range,
                                num_pos_feats=num_pos_feats,
                                num_queries=num_queries)

    # 1) Module glue (auto path: tiny -> pure-JAX fallback) for semantics.
    out = model.add_track_queries_to_target(target, k_pick)
    hs = jax.block_until_ready(out["track_query_hs_embeds"])
    assert hs.shape == (n_tracks, model.dim_tracklets), hs.shape
    ref = jax.block_until_ready(
        _sine_encoding_ref(out["tracklets_modified"], num_pos_feats))
    assert jnp.allclose(hs, ref, atol=1e-4, rtol=1e-4), float(jnp.abs(hs - ref).max())

    # 2) Pallas kernel forced on the small case (single full-dim block).
    hs_small = jax.block_until_ready(
        sine_encoding_tracklet(out["tracklets_modified"], num_pos_feats,
                               use_pallas=True))
    assert hs_small.shape == (n_tracks, model.dim_tracklets), hs_small.shape
    assert jnp.allclose(hs_small, ref, atol=1e-4, rtol=1e-4), \
        float(jnp.abs(hs_small - ref).max())

    # 3) Larger ragged case: 257*5 = 1285 rows -> two balanced "parallel"
    #    blocks, last block clipped by the pipeline (no pad/slice round-trip).
    x_big = jax.random.uniform(k_big, (257, frame_range, 4), dtype=jnp.float32)
    hs_big = jax.block_until_ready(sine_encoding_tracklet(x_big, num_pos_feats))
    ref_big = jax.block_until_ready(_sine_encoding_ref(x_big, num_pos_feats))
    assert hs_big.shape == (257, model.dim_tracklets), hs_big.shape
    assert jnp.allclose(hs_big, ref_big, atol=1e-4, rtol=1e-4), \
        float(jnp.abs(hs_big - ref_big).max())

    print("KERNEL_OK")
</pallas_src>

<mosaic_0001>
module attributes {stable_mosaic.version = 11 : i64} {
  func.func @_sine_embed_kernel(%arg0: i32, %arg1: memref<40x4xf32, #tpu.memory_space<vmem>>, %arg2: memref<8x128xf32, #tpu.memory_space<vmem>>, %arg3: memref<40x128xf32, #tpu.memory_space<vmem>>) attributes {dimension_semantics = [#tpu.dimension_semantics<parallel>], iteration_bounds = array<i64: 1>, scalar_prefetch = 0 : i64, scratch_operands = 0 : i64, tpu.core_type = #tpu.core_type<tc>, window_params = [{transform_indices = @transform_0, window_bounds = array<i64: 40, 4>}, {pipeline_mode = #tpu.pipeline_mode<synchronous>, transform_indices = @transform_1, window_bounds = array<i64: 8, 128>}, {transform_indices = @transform_2, window_bounds = array<i64: 40, 128>}]} {
    %c0 = arith.constant 0 : index
    %c0_0 = arith.constant 0 : index
    %0 = vector.load %arg1[%c0, %c0_0] : memref<40x4xf32, #tpu.memory_space<vmem>>, vector<40x4xf32>
    %c0_1 = arith.constant 0 : index
    %c0_2 = arith.constant 0 : index
    %1 = vector.load %arg2[%c0_1, %c0_2] : memref<8x128xf32, #tpu.memory_space<vmem>>, vector<4x128xf32>
    %cst = arith.constant dense<0.000000e+00> : vector<40x128xf32>
    %2 = tpu.matmul %0, %1, %cst {dimension_numbers = #tpu.dot_dimension_numbers<[1], [0], [0], [1], [0, 0, 1, 1], [], []>} : vector<40x4xf32>, vector<4x128xf32>, vector<40x128xf32> -> vector<40x128xf32>
    %c4 = arith.constant 4 : index
    %c0_3 = arith.constant 0 : index
    %3 = vector.load %arg2[%c4, %c0_3] : memref<8x128xf32, #tpu.memory_space<vmem>>, vector<1x128xf32>
    %4 = vector.broadcast %3 : vector<1x128xf32> to vector<40x128xf32>
    %5 = arith.addf %2, %4 : vector<40x128xf32>
    %cst_4 = arith.constant 0.318309873 : f32
    %6 = vector.broadcast %cst_4 : f32 to vector<40x128xf32>
    %7 = arith.mulf %5, %6 : vector<40x128xf32>
    %cst_5 = arith.constant 5.000000e-01 : f32
    %8 = vector.broadcast %cst_5 : f32 to vector<40x128xf32>
    %9 = arith.addf %7, %8 : vector<40x128xf32>
    %10 = math.floor %9 : vector<40x128xf32>
    %cst_6 = arith.constant 3.140625 : f32
    %11 = vector.broadcast %cst_6 : f32 to vector<40x128xf32>
    %12 = arith.mulf %10, %11 : vector<40x128xf32>
    %13 = arith.subf %5, %12 : vector<40x128xf32>
    %cst_7 = arith.constant 9.67653584E-4 : f32
    %14 = vector.broadcast %cst_7 : f32 to vector<40x128xf32>
    %15 = arith.mulf %10, %14 : vector<40x128xf32>
    %16 = arith.subf %13, %15 : vector<40x128xf32>
    %17 = arith.fptosi %10 : vector<40x128xf32> to vector<40x128xi32>
    %c1_i32 = arith.constant 1 : i32
    %18 = vector.broadcast %c1_i32 : i32 to vector<40x128xi32>
    %19 = arith.andi %17, %18 : vector<40x128xi32>
    %c0_i32 = arith.constant 0 : i32
    %20 = vector.broadcast %c0_i32 : i32 to vector<40x128xi32>
    %21 = arith.cmpi eq, %19, %20 : vector<40x128xi32>
    %cst_8 = arith.constant 1.000000e+00 : f32
    %cst_9 = arith.constant -1.000000e+00 : f32
    %22 = vector.broadcast %cst_8 : f32 to vector<40x128xf32>
    %23 = vector.broadcast %cst_9 : f32 to vector<40x128xf32>
    %24 = arith.select %21, %22, %23 : vector<40x128xi1>, vector<40x128xf32>
    %25 = arith.mulf %16, %16 : vector<40x128xf32>
    %cst_10 = arith.constant 2.75573188E-6 : f32
    %26 = vector.broadcast %cst_10 : f32 to vector<40x128xf32>
    %27 = arith.mulf %26, %25 : vector<40x128xf32>
    %cst_11 = arith.constant -1.98412701E-4 : f32
    %28 = vector.broadcast %cst_11 : f32 to vector<40x128xf32>
    %29 = arith.addf %27, %28 : vector<40x128xf32>
    %30 = arith.mulf %29, %25 : vector<40x128xf32>
    %cst_12 = arith.constant 0.00833333377 : f32
    %31 = vector.broadcast %cst_12 : f32 to vector<40x128xf32>
    %32 = arith.addf %30, %31 : vector<40x128xf32>
    %33 = arith.mulf %32, %25 : vector<40x128xf32>
    %cst_13 = arith.constant -0.166666672 : f32
    %34 = vector.broadcast %cst_13 : f32 to vector<40x128xf32>
    %35 = arith.addf %33, %34 : vector<40x128xf32>
    %36 = arith.mulf %16, %25 : vector<40x128xf32>
    %37 = arith.mulf %36, %35 : vector<40x128xf32>
    %38 = arith.addf %16, %37 : vector<40x128xf32>
    %39 = arith.mulf %24, %38 : vector<40x128xf32>
    %c0_14 = arith.constant 0 : index
    %c0_15 = arith.constant 0 : index
    %40 = vector.load %arg3[%c0_14, %c0_15] : memref<40x128xf32, #tpu.memory_space<vmem>>, vector<40x128xf32>
    tpu.vector_store %arg3[%c0_14, %c0_15], %39 {strides = array<i32>} : memref<40x128xf32, #tpu.memory_space<vmem>>, vector<40x128xf32>,
    return
  }
  func.func @transform_0(%arg0: i32) -> (i32, i32) {
    %c0_i32 = arith.constant 0 : i32
    %c0_i32_0 = arith.constant 0 : i32
    return %arg0, %c0_i32 : i32, i32
  }
  func.func @transform_1(%arg0: i32) -> (i32, i32) {
    %c0_i32 = arith.constant 0 : i32
    %c0_i32_0 = arith.constant 0 : i32
    %c0_i32_1 = arith.constant 0 : i32
    return %c0_i32, %c0_i32_0 : i32, i32
  }
  func.func @transform_2(%arg0: i32) -> (i32, i32) {
    %c0_i32 = arith.constant 0 : i32
    %c0_i32_0 = arith.constant 0 : i32
    return %arg0, %c0_i32 : i32, i32
  }
}

</mosaic_0001>

<llo_original>
// kernel: tpu_custom_call.1
$region0: #{tpu_custom_call.1}
  #allocation0 [shape = 'u32[]', space=smem, size = 0x4, offset = 0x4, fixed_abs, tag = 'smem constant byte address 0x4 - core index']
  #allocation1 [shape = 'u32[144,128]{1,0:T(1,128)}', space=vmem, size = 0x12000, scoped, tag = 'internal scratch']
  %s0 = inlined_call_operand.vmem [shape: f32[40,4], index: 0, kind: input, shape index: {}]
  %s1 = inlined_call_operand.vmem [shape: f32[8,128], index: 1, kind: input, shape index: {}]
  %s2 = inlined_call_operand.hbm [shape: f32[40,128], index: 2, kind: output, shape index: {}]
  %s3 = sld [smem:[#allocation0]]
  $region18: #{tpu_custom_call.1} parent=0
    _
  %s5 = ssub.s32 1, %s3
  %s6 = scalar_select 0, %s5, %s3
  $region1: #{tpu_custom_call.1} parent=0
    #allocation2 [shape = 'u8[20480]{0}', space=vmem, size = 0x5000, scoped, tag = 'output window, operand 0, single buffered']
    #allocation3 [shape = 's32[1]{0}', space=sflag, size = 0x4, scoped, tag = 'scoped memory for tpu_custom_call.1']
    %7 = vsyncpa [#allocation3], 0
    // Predicated region
    $region2: #{tpu_custom_call.1} parent=1 // pred_check
      _
    $region3: #{tpu_custom_call.1} parent=1 // pred_check_branch
      %9 = sbr.rel (0) target = $region5
    $region4: #{tpu_custom_call.1} parent=1 // pred_region
      _
    $region5: #{tpu_custom_call.1} parent=1 // pred_fallthru
      _
    // Predicated region
    $region6: #{tpu_custom_call.1} parent=1 // pred_check
      _
    $region7: #{tpu_custom_call.1} parent=1 // pred_check_branch
      %11 = sbr.rel (0) target = $region9
    $region8: #{tpu_custom_call.1} parent=1 // pred_region
      _
    $region9: #{tpu_custom_call.1} parent=1 // pred_fallthru
      _
    %v12 = vld [vmem:[%s0] sm:$0xff]
    %v13 = vld [vmem:[%s0 + $0x8] sm:$0xff]
    %v14 = vld [vmem:[%s0 + $0x10] sm:$0xff]
    %v15 = vld [vmem:[%s0 + $0x18] sm:$0xff]
    %v16 = vld [vmem:[%s0 + $0x20] sm:$0xff]
    %v17 = vld [vmem:[%s1] sm:$0xf]
    %v18 = vld [vmem:[%s1 + $0x4] sm:$0x1]
    %v19 = vlaneseq
    %v20 = vshrl.u32 %v19, 7
    %v21 = vsub.s32 0, %v20
    %v22 = vrot.slane %v18, %v21
    %vm23 = vcmask 31744
    %v25 = vsel %vm23, %v12, 0
    %v28 = vsel %vm23, %v13, 0
    %v31 = vsel %vm23, %v14, 0
    %v34 = vsel %vm23, %v15, 0
    %v37 = vsel %vm23, %v16, 0
    %vm39 = vcmask 1043456
    %v41 = vsel %vm39, %v17, 0
    %43 = vmatprep.subr.mxu0 0.0
    %44 = vmatpush1.msra.mxu0 0.0
    %45 = vmatprep.subr.mxu0 0.0
    %46 = vmatpush1.msra.mxu0 0.0
    %47 = vmatprep.subr.mxu0 0.0
    %48 = vmatpush1.msra.mxu0 0.0
    %49 = vmatprep.subr.mxu0 0.0
    %50 = vmatpush1.msra.mxu0 0.0
    %51 = vmatprep.subr.mxu0 0.0
    %52 = vmatpush1.msra.mxu0 0.0
    %53 = vmatprep.subr.mxu0 0.0
    %54 = vmatpush1.msra.mxu0 0.0
    %55 = vmatprep.subr.mxu0 0.0
    %56 = vmatpush1.msra.mxu0 0.0
    %57 = vmatprep.subr.mxu0 0.0
    %58 = vmatpush1.msra.mxu0 0.0
    %59 = vmatprep.subr.mxu0 0.0
    %60 = vmatpush1.msra.mxu0 0.0
    %61 = vmatprep.subr.mxu0 0.0
    %62 = vmatpush1.msra.mxu0 0.0
    %63 = vmatprep.subr.mxu0 0.0
    %64 = vmatpush1.msra.mxu0 0.0
    %65 = vmatprep.subr.mxu0 0.0
    %66 = vmatpush1.msra.mxu0 0.0
    %67 = vmatprep.subr.mxu0 0.0
    %68 = vmatpush1.msra.mxu0 0.0
    %69 = vmatprep.subr.mxu0 0.0
    %70 = vmatpush1.msra.mxu0 0.0
    %71 = vmatprep.subr.mxu0 0.0
    %72 = vmatpush1.msra.mxu0 0.0
    %73 = vmatprep.subr.mxu0 0.0
    %74 = vmatpush1.msra.mxu0 %v41
    %75 = vmatprep.subr.mxu0 0.0
    %76 = vmatpush2.msra.mxu0 0.0
    %77 = vmatprep.subr.mxu0 0.0
    %78 = vmatpush2.msra.mxu0 0.0
    %79 = vmatprep.subr.mxu0 0.0
    %80 = vmatpush2.msra.mxu0 0.0
    %81 = vmatprep.subr.mxu0 0.0
    %82 = vmatpush2.msra.mxu0 0.0
    %83 = vmatprep.subr.mxu0 0.0
    %84 = vmatpush2.msra.mxu0 0.0
    %85 = vmatprep.subr.mxu0 0.0
    %86 = vmatpush2.msra.mxu0 0.0
    %87 = vmatprep.subr.mxu0 0.0
    %88 = vmatpush2.msra.mxu0 0.0
    %89 = vmatprep.subr.mxu0 0.0
    %90 = vmatpush2.msra.mxu0 0.0
    %91 = vmatprep.subr.mxu0 0.0
    %92 = vmatpush2.msra.mxu0 0.0
    %93 = vmatprep.subr.mxu0 0.0
    %94 = vmatpush2.msra.mxu0 0.0
    %95 = vmatprep.subr.mxu0 0.0
    %96 = vmatpush2.msra.mxu0 0.0
    %97 = vmatprep.subr.mxu0 0.0
    %98 = vmatpush2.msra.mxu0 0.0
    %99 = vmatprep.subr.mxu0 0.0
    %100 = vmatpush2.msra.mxu0 0.0
    %101 = vmatprep.subr.mxu0 0.0
    %102 = vmatpush2.msra.mxu0 0.0
    %103 = vmatprep.subr.mxu0 0.0
    %104 = vmatpush2.msra.mxu0 0.0
    %105 = vmatprep.subr.mxu0 0.0
    %106 = vmatpush2.msra.mxu0 0.0
    %107 = vmatprep.mubr.f32.mxu0 0.0
    %108 = vmatmul.mubr.f32.gmra.mxu0 %v25
    %v109 = vpop.f32.mrf.mxu0
    %v110 = vadd.f32 %v22, %v109
    %v111 = vpop.f32.mrf.mxu0
    %112 = vmatprep.mubr.f32.mxu0 0.0
    %113 = vmatmul.mubr.f32.gmra.mxu0 %v28
    %v114 = vpop.f32.mrf.mxu0
    %v115 = vadd.f32 %v22, %v114
    %v116 = vpop.f32.mrf.mxu0
    %117 = vmatprep.mubr.f32.mxu0 0.0
    %118 = vmatmul.mubr.f32.gmra.mxu0 %v31
    %v119 = vpop.f32.mrf.mxu0
    %v120 = vadd.f32 %v22, %v119
    %v121 = vpop.f32.mrf.mxu0
    %122 = vmatprep.mubr.f32.mxu0 0.0
    %123 = vmatmul.mubr.f32.gmra.mxu0 %v34
    %v124 = vpop.f32.mrf.mxu0
    %v125 = vadd.f32 %v22, %v124
    %v126 = vpop.f32.mrf.mxu0
    %127 = vmatprep.mubr.f32.mxu0 0.0
    %128 = vmatmul.mubr.f32.gmra.mxu0 %v37
    %v129 = vpop.f32.mrf.mxu0
    %v130 = vadd.f32 %v22, %v129
    %v131 = vpop.f32.mrf.mxu0
    %132 = vdwg.mxu0
    %v133 = vmul.f32 %v110, 0.31830987
    %v134 = vmul.f32 %v115, 0.31830987
    %v135 = vmul.f32 %v120, 0.31830987
    %v136 = vmul.f32 %v125, 0.31830987
    %v137 = vmul.f32 %v130, 0.31830987
    %v138 = vadd.f32 %v133, 0.5
    %v139 = vadd.f32 %v134, 0.5
    %v140 = vadd.f32 %v135, 0.5
    %v141 = vadd.f32 %v136, 0.5
    %v142 = vadd.f32 %v137, 0.5
    %v143 = vfloor.f32 %v138
    %v144 = vfloor.f32 %v139
    %v145 = vfloor.f32 %v140
    %v146 = vfloor.f32 %v141
    %v147 = vfloor.f32 %v142
    %v148 = vmul.f32 %v143, 3.140625
    %v149 = vmul.f32 %v144, 3.140625
    %v150 = vmul.f32 %v145, 3.140625
    %v151 = vmul.f32 %v146, 3.140625
    %v152 = vmul.f32 %v147, 3.140625
    %v153 = vsub.f32 %v110, %v148
    %v154 = vsub.f32 %v115, %v149
    %v155 = vsub.f32 %v120, %v150
    %v156 = vsub.f32 %v125, %v151
    %v157 = vsub.f32 %v130, %v152
    %v158 = vmul.f32 %v143, 0.0009676536
    %v159 = vmul.f32 %v144, 0.0009676536
    %v160 = vmul.f32 %v145, 0.0009676536
    %v161 = vmul.f32 %v146, 0.0009676536
    %v162 = vmul.f32 %v147, 0.0009676536
    %v163 = vsub.f32 %v153, %v158
    %v164 = vsub.f32 %v154, %v159
    %v165 = vsub.f32 %v155, %v160
    %v166 = vsub.f32 %v156, %v161
    %v167 = vsub.f32 %v157, %v162
    %v168 = vcvt.f32.s32.to.zero.pseudo %v143
    %v169 = vcvt.f32.s32.to.zero.pseudo %v144
    %v170 = vcvt.f32.s32.to.zero.pseudo %v145
    %v171 = vcvt.f32.s32.to.zero.pseudo %v146
    %v172 = vcvt.f32.s32.to.zero.pseudo %v147
    %v173 = vand.u32 %v168, 1
    %v174 = vand.u32 %v169, 1
    %v175 = vand.u32 %v170, 1
    %v176 = vand.u32 %v171, 1
    %v177 = vand.u32 %v172, 1
    %vm178 = vcmp.eq.s32.totalorder %v173, 0
    %vm179 = vcmp.eq.s32.totalorder %v174, 0
    %vm180 = vcmp.eq.s32.totalorder %v175, 0
    %vm181 = vcmp.eq.s32.totalorder %v176, 0
    %vm182 = vcmp.eq.s32.totalorder %v177, 0
    %v183 = vsel %vm178, 1.0, -1.0
    %v184 = vsel %vm179, 1.0, -1.0
    %v185 = vsel %vm180, 1.0, -1.0
    %v186 = vsel %vm181, 1.0, -1.0
    %v187 = vsel %vm182, 1.0, -1.0
    %v188 = vmul.f32 %v163, %v163
    %v189 = vmul.f32 %v164, %v164
    %v190 = vmul.f32 %v165, %v165
    %v191 = vmul.f32 %v166, %v166
    %v192 = vmul.f32 %v167, %v167
    %v193 = vmul.f32 %v188, 2.7557319e-06
    %v194 = vmul.f32 %v189, 2.7557319e-06
    %v195 = vmul.f32 %v190, 2.7557319e-06
    %v196 = vmul.f32 %v191, 2.7557319e-06
    %v197 = vmul.f32 %v192, 2.7557319e-06
    %v198 = vadd.f32 %v193, -0.0001984127
    %v199 = vadd.f32 %v194, -0.0001984127
    %v200 = vadd.f32 %v195, -0.0001984127
    %v201 = vadd.f32 %v196, -0.0001984127
    %v202 = vadd.f32 %v197, -0.0001984127
    %v203 = vmul.f32 %v198, %v188
    %v204 = vmul.f32 %v199, %v189
    %v205 = vmul.f32 %v200, %v190
    %v206 = vmul.f32 %v201, %v191
    %v207 = vmul.f32 %v202, %v192
    %v208 = vadd.f32 %v203, 0.008333334
    %v209 = vadd.f32 %v204, 0.008333334
    %v210 = vadd.f32 %v205, 0.008333334
    %v211 = vadd.f32 %v206, 0.008333334
    %v212 = vadd.f32 %v207, 0.008333334
    %v213 = vmul.f32 %v208, %v188
    %v214 = vmul.f32 %v209, %v189
    %v215 = vmul.f32 %v210, %v190
    %v216 = vmul.f32 %v211, %v191
    %v217 = vmul.f32 %v212, %v192
    %v218 = vadd.f32 %v213, -0.16666667
    %v219 = vadd.f32 %v214, -0.16666667
    %v220 = vadd.f32 %v215, -0.16666667
    %v221 = vadd.f32 %v216, -0.16666667
    %v222 = vadd.f32 %v217, -0.16666667
    %v223 = vmul.f32 %v163, %v188
    %v224 = vmul.f32 %v164, %v189
    %v225 = vmul.f32 %v165, %v190
    %v226 = vmul.f32 %v166, %v191
    %v227 = vmul.f32 %v167, %v192
    %v228 = vmul.f32 %v223, %v218
    %v229 = vmul.f32 %v224, %v219
    %v230 = vmul.f32 %v225, %v220
    %v231 = vmul.f32 %v226, %v221
    %v232 = vmul.f32 %v227, %v222
    %v233 = vadd.f32 %v163, %v228
    %v234 = vadd.f32 %v164, %v229
    %v235 = vadd.f32 %v165, %v230
    %v236 = vadd.f32 %v166, %v231
    %v237 = vadd.f32 %v167, %v232
    %v238 = vmul.f32 %v183, %v233
    %v239 = vmul.f32 %v184, %v234
    %v240 = vmul.f32 %v185, %v235
    %v241 = vmul.f32 %v186, %v236
    %v242 = vmul.f32 %v187, %v237
    %243 = vst [vmem:[#allocation2] sm:$0xff] %v238
    %244 = vst [vmem:[#allocation2 + $0x8] sm:$0xff] %v239
    %245 = vst [vmem:[#allocation2 + $0x10] sm:$0xff] %v240
    %246 = vst [vmem:[#allocation2 + $0x18] sm:$0xff] %v241
    %247 = vst [vmem:[#allocation2 + $0x20] sm:$0xff] %v242
    // Predicated region
    $region10: #{tpu_custom_call.1} parent=1 // pred_check
      _
    $region11: #{tpu_custom_call.1} parent=1 // pred_check_branch
      %249 = sbr.rel (0) target = $region13
    $region12: #{tpu_custom_call.1} parent=1 // pred_region
      %s251 = ssub.s32 640, 640
      %252 = vsyncadd [#allocation3], %s251
      %s253 = sshll.u32 [#allocation2], 4
      %s254 = int_to_ptr.vmem [resolvable:$true] %s253
      %259 = dma.vmem_to_hbm [thread:$0]  %s254, 640, %s2, [#allocation3], 128, 128, 8
    $region13: #{tpu_custom_call.1} parent=1 // pred_fallthru
      _
    // Predicated region
    $region14: #{tpu_custom_call.1} parent=1 // pred_check
      _
    $region15: #{tpu_custom_call.1} parent=1 // pred_check_branch
      %261 = sbr.rel (0) target = $region17
    $region16: #{tpu_custom_call.1} parent=1 // pred_region
      %262 = dma.done [#allocation3], 640
    $region17: #{tpu_custom_call.1} parent=1 // pred_fallthru
      _
    %263 = vsyncpa [#allocation3], 1

</llo_original>
